<compile_context>
chip_gen: v5e
topology: v5e:2x2
jax: 0.10.0
libtpu: 0.0.40
codegen_flags: <defaults>
</compile_context>

<pallas_src>
import jax
import jax.numpy as jnp
from jax.experimental import pallas as pl
from jax.experimental.pallas import tpu as pltpu

_LANE = 128
_TARGET_BLOCK_BYTES = 4 * 1024 * 1024     # ~4 MiB per block (per perf review)
_MIN_GRID_STEPS = 8                       # pipeline depth / v7x two-TC split
_VMEM_LIMIT_BYTES = 48 * 1024 * 1024      # <= physical VMEM on v5e/v6e/v7x


def _drop_path_kernel(s_ref, x_ref, o_ref):
    # s_ref: (B, 1) f32 keep-scale (0.0 or 1/keep_prob); x_ref/o_ref: (B, tile_n).
    o_ref[...] = x_ref[...] * s_ref[...].astype(x_ref.dtype)


def drop_path(x, drop_prob: float = 0.0, *, training: bool = True,
              scale_by_keep: bool = True, key=None,
              target_block_bytes: int = _TARGET_BLOCK_BYTES):
    """Pallas TPU implementation of stochastic depth (per-sample drop)."""
    if drop_prob == 0.0 or not training:
        return x
    keep_prob = 1.0 - drop_prob
    scale = (1.0 / keep_prob) if (scale_by_keep and keep_prob > 0.0) else 1.0

    if key is None:
        # TODO(synk): callers should pass a fresh key each step; this fallback
        # reuses the same drop mask on every call.
        key = jax.random.PRNGKey(0)

    orig_shape = x.shape
    B = int(orig_shape[0])
    N = 1
    for d in orig_shape[1:]:
        N *= int(d)
    itemsize = x.dtype.itemsize

    # Per-sample keep-scale vector, computed once in the wrapper (mask hoist).
    keep = jax.random.bernoulli(key, p=keep_prob, shape=(B,))
    scale_vec = jnp.where(keep, scale, 0.0).astype(jnp.float32).reshape(B, 1)

    # Free reshape: collapse contiguous trailing dims.  No padding, no slicing.
    xf = x.reshape(B, N)

    # Byte-budgeted, lane-multiple tile along the flattened feature axis.
    tile_n = (target_block_bytes // max(1, B * itemsize)) // _LANE * _LANE
    tile_n = max(tile_n, _LANE)
    total_bytes = B * N * itemsize
    if total_bytes >= 2 * 1024 * 1024:
        # Keep >= ~_MIN_GRID_STEPS blocks so the DMA pipeline has depth and
        # v7x can shard the grid across both TensorCores.
        cap = pl.cdiv(pl.cdiv(N, _MIN_GRID_STEPS), _LANE) * _LANE
        tile_n = min(tile_n, max(cap, _LANE))
    if tile_n >= N:
        tile_n = N  # single full-extent block; also covers N % 128 != 0 cleanly
    num_blocks = pl.cdiv(N, tile_n)

    out = pl.pallas_call(
        _drop_path_kernel,
        out_shape=jax.ShapeDtypeStruct((B, N), x.dtype),
        grid=(num_blocks,),
        in_specs=[
            pl.BlockSpec((B, 1), lambda j: (0, 0)),        # tiny keep-scale vec
            pl.BlockSpec((B, tile_n), lambda j: (0, j)),   # data tile
        ],
        out_specs=pl.BlockSpec((B, tile_n), lambda j: (0, j)),
        compiler_params=pltpu.CompilerParams(
            dimension_semantics=("parallel",),
            vmem_limit_bytes=_VMEM_LIMIT_BYTES),
        cost_estimate=pl.CostEstimate(
            flops=B * N, transcendentals=0,
            bytes_accessed=2 * B * N * itemsize + B * 4),
    )(scale_vec, xf)

    return out.reshape(orig_shape)


class DropPath:
    """Mirror of the PyTorch module (forward only)."""

    def __init__(self, drop_prob: float = 0.0, scale_by_keep: bool = True):
        self.drop_prob = drop_prob
        self.scale_by_keep = scale_by_keep
        self.training = True

    def __call__(self, x, key=None):
        return drop_path(x, self.drop_prob, training=self.training,
                         scale_by_keep=self.scale_by_keep, key=key)

    def extra_repr(self):
        return f"drop_prob={round(self.drop_prob, 3):0.3f}"


if __name__ == "__main__":
    import numpy as np

    root = jax.random.PRNGKey(0)
    k_d1, k_m1, k_d2, k_m2, k_d3, k_m3 = jax.random.split(root, 6)

    drop_prob = 0.5
    keep_prob = 1.0 - drop_prob
    mod = DropPath(drop_prob=drop_prob, scale_by_keep=True)

    # Case 1: lane-aligned feature size (B=2, C=4, H=16, W=16 -> N=1024).
    x1 = jax.random.normal(k_d1, (2, 4, 16, 16), dtype=jnp.float32)
    o1 = jax.block_until_ready(mod(x1, key=k_m1))
    keep1 = np.asarray(jax.random.bernoulli(k_m1, p=keep_prob, shape=(2,)),
                       dtype=np.float32)
    ref1 = np.asarray(x1) * (keep1[:, None, None, None] / keep_prob)
    assert o1.shape == x1.shape
    assert np.allclose(np.asarray(o1), ref1, atol=1e-6), "mismatch (aligned case)"

    # Case 2: feature size not a multiple of 128 (full-extent block, no padding).
    x2 = jax.random.normal(k_d2, (2, 3, 5, 7), dtype=jnp.float32)
    o2 = jax.block_until_ready(mod(x2, key=k_m2))
    keep2 = np.asarray(jax.random.bernoulli(k_m2, p=keep_prob, shape=(2,)),
                       dtype=np.float32)
    ref2 = np.asarray(x2) * (keep2[:, None, None, None] / keep_prob)
    assert o2.shape == x2.shape
    assert np.allclose(np.asarray(o2), ref2, atol=1e-6), "mismatch (N%128!=0 case)"

    # Case 3: force multi-block tiling with a masked partial boundary block
    # (N = 4800, tiny 2 KiB budget -> tile_n = 256 -> 19 blocks, last one partial).
    x3 = jax.random.normal(k_d3, (2, 3, 40, 40), dtype=jnp.float32)
    o3 = jax.block_until_ready(
        drop_path(x3, drop_prob, training=True, scale_by_keep=True,
                  key=k_m3, target_block_bytes=2048))
    keep3 = np.asarray(jax.random.bernoulli(k_m3, p=keep_prob, shape=(2,)),
                       dtype=np.float32)
    ref3 = np.asarray(x3) * (keep3[:, None, None, None] / keep_prob)
    assert o3.shape == x3.shape
    assert np.allclose(np.asarray(o3), ref3, atol=1e-6), "mismatch (partial-block case)"

    # Eval mode and drop_prob == 0 are identity.
    mod_eval = DropPath(drop_prob=drop_prob)
    mod_eval.training = False
    assert np.allclose(np.asarray(mod_eval(x1)), np.asarray(x1))
    assert np.allclose(np.asarray(DropPath(drop_prob=0.0)(x1)), np.asarray(x1))

    print("KERNEL_OK")
</pallas_src>

<mosaic_0001>
module attributes {stable_mosaic.version = 11 : i64} {
  func.func @_drop_path_kernel(%arg0: i32, %arg1: memref<2x1xf32, #tpu.memory_space<vmem>>, %arg2: memref<2x1024xf32, #tpu.memory_space<vmem>>, %arg3: memref<2x1024xf32, #tpu.memory_space<vmem>>) attributes {dimension_semantics = [#tpu.dimension_semantics<parallel>], iteration_bounds = array<i64: 1>, scalar_prefetch = 0 : i64, scratch_operands = 0 : i64, tpu.core_type = #tpu.core_type<tc>, window_params = [{pipeline_mode = #tpu.pipeline_mode<synchronous>, transform_indices = @transform_0, window_bounds = array<i64: 2, 1>}, {transform_indices = @transform_1, window_bounds = array<i64: 2, 1024>}, {transform_indices = @transform_2, window_bounds = array<i64: 2, 1024>}]} {
    %c0 = arith.constant 0 : index
    %c0_0 = arith.constant 0 : index
    %0 = vector.load %arg2[%c0, %c0_0] : memref<2x1024xf32, #tpu.memory_space<vmem>>, vector<2x1024xf32>
    %c0_1 = arith.constant 0 : index
    %c0_2 = arith.constant 0 : index
    %1 = vector.load %arg1[%c0_1, %c0_2] : memref<2x1xf32, #tpu.memory_space<vmem>>, vector<2x1xf32>
    %2 = vector.broadcast %1 : vector<2x1xf32> to vector<2x1024xf32>
    %3 = arith.mulf %0, %2 : vector<2x1024xf32>
    %c0_3 = arith.constant 0 : index
    %c0_4 = arith.constant 0 : index
    %4 = vector.load %arg3[%c0_3, %c0_4] : memref<2x1024xf32, #tpu.memory_space<vmem>>, vector<2x1024xf32>
    tpu.vector_store %arg3[%c0_3, %c0_4], %3 {strides = array<i32>} : memref<2x1024xf32, #tpu.memory_space<vmem>>, vector<2x1024xf32>,
    return
  }
  func.func @transform_0(%arg0: i32) -> (i32, i32) {
    %c0_i32 = arith.constant 0 : i32
    %c0_i32_0 = arith.constant 0 : i32
    %c0_i32_1 = arith.constant 0 : i32
    return %c0_i32, %c0_i32_0 : i32, i32
  }
  func.func @transform_1(%arg0: i32) -> (i32, i32) {
    %c0_i32 = arith.constant 0 : i32
    %c0_i32_0 = arith.constant 0 : i32
    return %c0_i32, %arg0 : i32, i32
  }
  func.func @transform_2(%arg0: i32) -> (i32, i32) {
    %c0_i32 = arith.constant 0 : i32
    %c0_i32_0 = arith.constant 0 : i32
    return %c0_i32, %arg0 : i32, i32
  }
}

</mosaic_0001>

<llo_original>
// kernel: tpu_custom_call.1
$region0: #{tpu_custom_call.1}
  #allocation0 [shape = 'u32[]', space=smem, size = 0x4, offset = 0x4, fixed_abs, tag = 'smem constant byte address 0x4 - core index']
  #allocation1 [shape = 'u32[72,128]{1,0:T(1,128)}', space=vmem, size = 0x9000, scoped, tag = 'internal scratch']
  %s0 = inlined_call_operand.vmem [shape: f32[2,1], index: 0, kind: input, shape index: {}]
  %s1 = inlined_call_operand.hbm [shape: f32[2,1024], index: 1, kind: input, shape index: {}]
  %s2 = inlined_call_operand.hbm [shape: f32[2,1024], index: 2, kind: output, shape index: {}]
  %s3 = sld [smem:[#allocation0]]
  $region22: #{tpu_custom_call.1} parent=0
    _
  %s5 = ssub.s32 1, %s3
  %s6 = scalar_select 0, %s5, %s3
  $region1: #{tpu_custom_call.1} parent=0
    #allocation2 [shape = 'u8[8192]{0}', space=vmem, size = 0x2000, scoped, tag = 'input window, operand 1, single buffered']
    #allocation3 [shape = 's32[1]{0}', space=sflag, size = 0x4, scoped, tag = 'scoped memory for tpu_custom_call.1']
    #allocation4 [shape = 's32[1]{0}', space=sflag, size = 0x4, scoped, tag = 'scoped memory for tpu_custom_call.1']
    #allocation5 [shape = 'u8[8192]{0}', space=vmem, size = 0x2000, scoped, tag = 'output window, operand 0, single buffered']
    %7 = vsyncpa [#allocation3], 0
    %8 = vsyncpa [#allocation4], 0
    // Predicated region
    $region2: #{tpu_custom_call.1} parent=1 // pred_check
      _
    $region3: #{tpu_custom_call.1} parent=1 // pred_check_branch
      %10 = sbr.rel (0) target = $region5
    $region4: #{tpu_custom_call.1} parent=1 // pred_region
      _
    $region5: #{tpu_custom_call.1} parent=1 // pred_fallthru
      _
    // Predicated region
    $region6: #{tpu_custom_call.1} parent=1 // pred_check
      _
    $region7: #{tpu_custom_call.1} parent=1 // pred_check_branch
      %12 = sbr.rel (0) target = $region9
    $region8: #{tpu_custom_call.1} parent=1 // pred_region
      %14 = vsyncadd [#allocation3], 0
      %s16 = sshll.u32 %s1, 4
      %s17 = int_to_ptr.hbm [resolvable:$true] %s16
      %s18 = sshll.u32 [#allocation2], 4
      %s19 = int_to_ptr.vmem [resolvable:$true] %s18
      %21 = dma.hbm_to_vmem [thread:$0]  %s17, 256, %s19, [#allocation3]
    $region9: #{tpu_custom_call.1} parent=1 // pred_fallthru
      _
    // Predicated region
    $region10: #{tpu_custom_call.1} parent=1 // pred_check
      _
    $region11: #{tpu_custom_call.1} parent=1 // pred_check_branch
      %23 = sbr.rel (0) target = $region13
    $region12: #{tpu_custom_call.1} parent=1 // pred_region
      %25 = dma.done [#allocation3], 256
    $region13: #{tpu_custom_call.1} parent=1 // pred_fallthru
      _
    %v26 = vld [vmem:[#allocation2] sm:$0xff]
    %v27 = vld [vmem:[#allocation2 + $0x8] sm:$0xff]
    %v28 = vld [vmem:[%s0] sm:$0x3]
    %30 = vset.pattern.permute.xlu0 0
    %31 = vperm.xlu0 %30, %v28
    %v32 = vpop.permute.xlu0 %31
    %v34 = vunpack.c.l.s4 269488144
    %v35 = vunpack.c.0.s8 %v34
    %v36 = vperm.slane %v32, %v35
    %v38 = vmul.f32 %v26, %v36
    %v39 = vmul.f32 %v27, %v36
    %40 = vst [vmem:[#allocation5] sm:$0xff] %v38
    %41 = vst [vmem:[#allocation5 + $0x8] sm:$0xff] %v39
    // Predicated region
    $region14: #{tpu_custom_call.1} parent=1 // pred_check
      _
    $region15: #{tpu_custom_call.1} parent=1 // pred_check_branch
      %43 = sbr.rel (0) target = $region17
    $region16: #{tpu_custom_call.1} parent=1 // pred_region
      %45 = vsyncadd [#allocation4], 0
      %s47 = sshll.u32 [#allocation5], 4
      %s48 = int_to_ptr.vmem [resolvable:$true] %s47
      %s49 = sshll.u32 %s2, 4
      %s50 = int_to_ptr.hbm [resolvable:$true] %s49
      %52 = dma.vmem_to_hbm [thread:$0]  %s48, 256, %s50, [#allocation4]
    $region17: #{tpu_custom_call.1} parent=1 // pred_fallthru
      _
    // Predicated region
    $region18: #{tpu_custom_call.1} parent=1 // pred_check
      _
    $region19: #{tpu_custom_call.1} parent=1 // pred_check_branch
      %54 = sbr.rel (0) target = $region21
    $region20: #{tpu_custom_call.1} parent=1 // pred_region
      %56 = dma.done [#allocation4], 256
    $region21: #{tpu_custom_call.1} parent=1 // pred_fallthru
      _
    %57 = vsyncpa [#allocation3], 1
    %58 = vsyncpa [#allocation4], 1

</llo_original>
